<compile_context>
chip_gen: v7x
topology: tpu7x:2x2x1
jax: 0.10.0
libtpu: 0.0.40
codegen_flags: <defaults>
</compile_context>

<pallas_src>
import functools

import jax
import jax.numpy as jnp
from jax.experimental import pallas as pl
from jax.experimental.pallas import tpu as pltpu


def _leaky_relu(x, slope=0.01):
    # torch.nn.LeakyReLU default negative_slope = 0.01
    return jnp.where(x > 0, x, slope * x)


def _nll_kernel(*refs, batch_size, tile_rows, inner_steps, merge_l1, use_bf16,
                user_dim, loc_dim):
    """One batch tile; accumulates the tile's NLL contribution per shard.

    refs (merged layer-1):
      user[tb,ud] loc[tb,ld] price[1,1,tb] w1[in,128] b1[1,128] w2[128,64]
      b2[1,64] w3[64,K] b3[1,K] tpT[3,K] | out[1,1,1] | xcat[tb,in] acc[1,1]
    refs (split layer-1): same but w1u[ud,128], w1l[ld,128] instead of w1 and
      no xcat scratch.
    tpT rows: [mu, log|delta|, 0.5/|delta|^2] (computed once in the wrapper).
    """
    if merge_l1:
        (user_ref, loc_ref, price_ref, w1_ref, b1_ref, w2_ref, b2_ref,
         w3_ref, b3_ref, tpT_ref, out_ref, xcat_ref, acc_ref) = refs
    else:
        (user_ref, loc_ref, price_ref, w1u_ref, w1l_ref, b1_ref, w2_ref, b2_ref,
         w3_ref, b3_ref, tpT_ref, out_ref, acc_ref) = refs

    s = pl.program_id(0)        # shard (parallel; maps to a TensorCore on v7x)
    i = pl.program_id(1)        # batch tile within shard (reduction axis)

    @pl.when(i == 0)
    def _init():
        acc_ref[...] = jnp.zeros_like(acc_ref)

    cdt = jnp.bfloat16 if use_bf16 else jnp.float32

    # ---- user_loc_net MLP (MXU matmuls, f32 accumulation) ----
    if merge_l1:
        # Merge the split layer-1 dot: two cheap VMEM stores, one MXU pass-group.
        xcat_ref[:, 0:user_dim] = user_ref[...].astype(cdt)
        xcat_ref[:, user_dim:user_dim + loc_dim] = loc_ref[...].astype(cdt)
        h1 = jnp.dot(xcat_ref[...], w1_ref[...],
                     preferred_element_type=jnp.float32) + b1_ref[...]
    else:
        h1 = (jnp.dot(user_ref[...].astype(cdt), w1u_ref[...],
                      preferred_element_type=jnp.float32)
              + jnp.dot(loc_ref[...].astype(cdt), w1l_ref[...],
                        preferred_element_type=jnp.float32)
              + b1_ref[...])
    h1 = _leaky_relu(h1)
    h2 = jnp.dot(h1.astype(cdt), w2_ref[...],
                 preferred_element_type=jnp.float32) + b2_ref[...]
    h2 = _leaky_relu(h2)
    h3 = jnp.dot(h2.astype(cdt), w3_ref[...],
                 preferred_element_type=jnp.float32) + b3_ref[...]
    # Sigmoid omitted: strictly monotonic, argmax(sigmoid(h3)) == argmax(h3).

    k = h3.shape[1]

    # ---- first-occurrence argmax over groups (matches torch.max tie-break) ----
    max_v = jnp.max(h3, axis=1, keepdims=True)                    # [tb, 1]
    col = jax.lax.broadcasted_iota(jnp.int32, h3.shape, 1)        # [tb, K]
    cand = jnp.where(h3 >= max_v, col, k)
    first_idx = jnp.min(cand, axis=1, keepdims=True)              # [tb, 1]
    onehot = (col == first_idx).astype(jnp.float32)               # [tb, K]

    # ---- NaN-safe validity mask: features are NOT padded in HBM; rows >= B and
    # the clamped duplicate tile contribute exactly zero regardless of the
    # garbage the boundary / duplicate DMA may have left in the buffers. ----
    row = jax.lax.broadcasted_iota(jnp.int32, (tile_rows, 1), 0)
    global_row = (s * inner_steps + i) * tile_rows + row
    onehot_m = jnp.where(global_row < batch_size, onehot, 0.0)    # [tb, K]

    # ---- per-group sufficient statistics (price stays lane-major: no relayout)
    # n_g = #rows in group, s1_g = sum price, s2_g = sum price^2 (price padded
    # rows are exact zeros and masked out of onehot_m anyway).
    price_row = price_ref[0]                                      # [1, tb] f32
    n_g = jnp.sum(onehot_m, axis=0, keepdims=True)                # [1, K]
    s1_g = jnp.dot(price_row, onehot_m,
                   preferred_element_type=jnp.float32)            # [1, K]
    s2_g = jnp.dot(price_row * price_row, onehot_m,
                   preferred_element_type=jnp.float32)            # [1, K]

    mu_g = tpT_ref[0:1, :]        # [1, K]
    ln_g = tpT_ref[1:2, :]        # log|delta|
    inv_g = tpT_ref[2:3, :]       # 0.5 / |delta|^2

    # sum_r [ln_delta - (mu - p)^2 * inv] grouped by selected group:
    #   n*(ln - inv*mu^2) + 2*mu*inv*s1 - inv*s2
    per_g = (n_g * (ln_g - inv_g * mu_g * mu_g)
             + 2.0 * (mu_g * inv_g) * s1_g
             - inv_g * s2_g)                                      # [1, K]
    # Groups never selected in this tile contribute exactly 0 (also guards
    # 0 * inf when a group has delta == 0 but is never picked).
    per_g = jnp.where(n_g > 0.0, per_g, 0.0)

    acc_ref[...] += jnp.sum(per_g, axis=1, keepdims=True)         # [1, 1]

    @pl.when(i == inner_steps - 1)
    def _finalize():
        # loss = sum(ln_delta - pmd) / B ; the module returns -loss.
        out_ref[...] = jnp.reshape(
            acc_ref[...] * (-1.0 / float(batch_size)), (1, 1, 1))


def _round_up(x, m):
    return ((x + m - 1) // m) * m


def _default_layout():
    """(tile_rows, num_shards, vmem_limit_bytes) picked per chip generation."""
    tile, shards, limit = 1024, 1, 32 * 1024 * 1024      # conservative fallback
    try:
        info = pltpu.get_tpu_info()
        vmem = getattr(info, "vmem_capacity_bytes", None)
        if vmem:
            if vmem >= 100 * 1024 * 1024:     # v5e / v6e: 128 MiB VMEM, 1 TC
                tile, shards, limit = 4096, 1, 64 * 1024 * 1024
            else:                              # v7x-like: 64 MiB VMEM, 2 TCs
                tile, shards, limit = 2048, 2, 32 * 1024 * 1024
            limit = min(limit, max(vmem - (16 << 20), 16 << 20))
    except Exception:
        pass
    return tile, shards, limit


def mi_price_likelihood_v1_forward(params, feat_user, feat_loc, feat_price, *,
                                   tile_rows=None, num_shards=None,
                                   vmem_limit_bytes=None, use_bf16=True):
    """Forward pass of mi_price_likelihood_v1 (returns the scalar -loss)."""
    B, user_dim = feat_user.shape
    loc_dim = feat_loc.shape[1]
    in_dim = user_dim + loc_dim
    k = params["theta"].shape[0]

    auto_tile, auto_shards, auto_vmem = _default_layout()
    if tile_rows is None:
        tile_rows = auto_tile
    if num_shards is None:
        num_shards = auto_shards
    if vmem_limit_bytes is None:
        vmem_limit_bytes = auto_vmem

    # ---- static tile / shard layout (no feature padding in HBM) ----
    tb = _round_up(min(tile_rows, _round_up(B, 8)), 8)
    n_tiles = pl.cdiv(B, tb)
    if n_tiles < num_shards:
        num_shards = 1
    inner_steps = _round_up(n_tiles, num_shards) // num_shards
    n_last = n_tiles - 1

    w_dtype = jnp.bfloat16 if use_bf16 else jnp.float32

    # Weights / biases (tiny; stay VMEM-resident via constant index maps).
    w1 = params["w1"].astype(w_dtype)
    b1 = params["b1"].astype(jnp.float32)
    w2 = params["w2"].astype(w_dtype)
    b2 = params["b2"].astype(jnp.float32)
    w3 = params["w3"].astype(w_dtype)
    b3 = params["b3"].astype(jnp.float32)

    # Packed per-group table rows: [mu, log|delta|, 0.5/|delta|^2]
    # (K logs/divides computed once here, not per row inside the kernel).
    theta = params["theta"].astype(jnp.float32)
    d_g = jnp.abs(theta[:, 1])
    tpT = jnp.stack([theta[:, 0], jnp.log(d_g), 0.5 / (d_g * d_g)], axis=0)  # [3,K]

    # Price only (4 B/row) is padded + laid out lane-major: (n_tiles, 1, tb).
    price = feat_price.reshape(-1).astype(jnp.float32)
    price = jnp.pad(price, (0, n_tiles * tb - B)).reshape(n_tiles, 1, tb)

    merge_l1 = in_dim <= 128

    def batch_map(s, i):
        # Clamp tiles created by the shard round-up; they are fully masked
        # inside the kernel (global_row >= B), so re-reading the last real
        # block is harmless.
        t = jnp.minimum(s * inner_steps + i, n_last)
        return (t, 0)

    def price_map(s, i):
        t = jnp.minimum(s * inner_steps + i, n_last)
        return (t, 0, 0)

    const2 = lambda s, i: (0, 0)

    in_specs = [
        pl.BlockSpec((tb, user_dim), batch_map),
        pl.BlockSpec((tb, loc_dim), batch_map),
        pl.BlockSpec((1, 1, tb), price_map),
    ]
    inputs = [feat_user, feat_loc, price]
    if merge_l1:
        in_specs += [pl.BlockSpec((in_dim, 128), const2)]
        inputs += [w1]
    else:
        in_specs += [pl.BlockSpec((user_dim, 128), const2),
                     pl.BlockSpec((loc_dim, 128), const2)]
        inputs += [w1[:user_dim], w1[user_dim:]]
    in_specs += [pl.BlockSpec((1, 128), const2),
                 pl.BlockSpec((128, 64), const2),
                 pl.BlockSpec((1, 64), const2),
                 pl.BlockSpec((64, k), const2),
                 pl.BlockSpec((1, k), const2),
                 pl.BlockSpec((3, k), const2)]
    inputs += [b1, w2, b2, w3, b3, tpT]

    scratch = []
    if merge_l1:
        scratch.append(pltpu.VMEM((tb, in_dim), w_dtype))   # merged [user|loc] tile
    scratch.append(pltpu.VMEM((1, 1), jnp.float32))          # per-shard accumulator

    kernel = functools.partial(
        _nll_kernel, batch_size=B, tile_rows=tb, inner_steps=inner_steps,
        merge_l1=merge_l1, use_bf16=use_bf16, user_dim=user_dim, loc_dim=loc_dim)

    partials = pl.pallas_call(
        kernel,
        out_shape=jax.ShapeDtypeStruct((num_shards, 1, 1), jnp.float32),
        grid_spec=pltpu.PrefetchScalarGridSpec(
            num_scalar_prefetch=0,
            grid=(num_shards, inner_steps),
            in_specs=in_specs,
            out_specs=pl.BlockSpec((1, 1, 1), lambda s, i: (s, 0, 0)),
            scratch_shapes=scratch,
        ),
        compiler_params=pltpu.CompilerParams(
            dimension_semantics=("parallel", "arbitrary"),
            vmem_limit_bytes=vmem_limit_bytes,
        ),
    )(*inputs)

    # Each shard emitted -sum/B of its rows; combine across shards.
    return jnp.sum(partials)


def init_params(key, user_dim, loc_dim, num_groups):
    """Deterministic parameter init mirroring the PyTorch module's shapes."""
    input_dim = user_dim + loc_dim
    ks = jax.random.split(key, 7)

    def linear(kw, kb, fan_in, fan_out):
        bound = 1.0 / (fan_in ** 0.5)
        w = jax.random.uniform(kw, (fan_in, fan_out), jnp.float32, -bound, bound)
        b = jax.random.uniform(kb, (1, fan_out), jnp.float32, -bound, bound)
        return w, b

    w1, b1 = linear(ks[0], ks[1], input_dim, 128)
    w2, b2 = linear(ks[2], ks[3], 128, 64)
    w3, b3 = linear(ks[4], ks[5], 64, num_groups)

    theta = jax.random.uniform(ks[6], (num_groups, 2), jnp.float32, -0.1, 0.1)
    theta = theta.at[:, 1].set(jnp.abs(theta[:, 1]))  # theta[:,1] = |theta[:,1]|

    return {"w1": w1, "b1": b1, "w2": w2, "b2": b2,
            "w3": w3, "b3": b3, "theta": theta}


def _reference_forward(params, feat_user, feat_loc, feat_price):
    """Pure-JAX reference (mirrors the PyTorch forward) for validation."""
    x = jnp.concatenate([feat_user, feat_loc], axis=1)
    B = x.shape[0]
    h = _leaky_relu(x @ params["w1"] + params["b1"])
    h = _leaky_relu(h @ params["w2"] + params["b2"])
    att = jax.nn.sigmoid(h @ params["w3"] + params["b3"])
    max_id = jnp.argmax(att, axis=1)
    pp = params["theta"][max_id]                       # [B, 2]
    mu = pp[:, 0:1]
    delta = jnp.abs(pp[:, 1:2])
    ln_delta = jnp.log(delta)
    pm = (mu - feat_price) ** 2
    pmd = pm / (delta ** 2) / 2.0
    loss = (jnp.sum(ln_delta) - jnp.sum(pmd)) / B
    return -loss


if __name__ == "__main__":
    USER_DIM, LOC_DIM, K, BATCH = 8, 8, 4, 8

    key = jax.random.PRNGKey(0)
    k_param, k_u, k_l, k_p = jax.random.split(key, 4)

    params = init_params(k_param, USER_DIM, LOC_DIM, K)
    feat_user = jax.random.normal(k_u, (BATCH, USER_DIM), jnp.float32)
    feat_loc = jax.random.normal(k_l, (BATCH, LOC_DIM), jnp.float32)
    feat_price = jax.random.normal(k_p, (BATCH, 1), jnp.float32)

    ref = _reference_forward(params, feat_user, feat_loc, feat_price)

    # f32 MXU path: tight validation against the pure-JAX reference.
    out_f32 = mi_price_likelihood_v1_forward(
        params, feat_user, feat_loc, feat_price, use_bf16=False)
    out_f32 = jax.block_until_ready(out_f32)
    assert jnp.allclose(out_f32, ref, rtol=1e-4, atol=1e-4), (out_f32, ref)

    # Larger ragged batch: multi-tile grid, 2-shard split with a clamped duplicate
    # tile, a partially out-of-bounds last block, and the NaN-safe row mask.
    BIG = 40
    kb_u, kb_l, kb_p = jax.random.split(jax.random.PRNGKey(1), 3)
    fu = jax.random.normal(kb_u, (BIG, USER_DIM), jnp.float32)
    fl = jax.random.normal(kb_l, (BIG, LOC_DIM), jnp.float32)
    fp = jax.random.normal(kb_p, (BIG, 1), jnp.float32)
    out_big = mi_price_likelihood_v1_forward(
        params, fu, fl, fp, tile_rows=16, num_shards=2, use_bf16=False)
    out_big = jax.block_until_ready(out_big)
    ref_big = _reference_forward(params, fu, fl, fp)
    assert jnp.allclose(out_big, ref_big, rtol=1e-4, atol=1e-4), (out_big, ref_big)

    # Default (bf16 MXU) path: near-tie rows can legitimately flip the argmax and
    # select a different theta group, so only require a finite result here.
    out_bf16 = mi_price_likelihood_v1_forward(params, feat_user, feat_loc, feat_price)
    out_bf16 = jax.block_until_ready(out_bf16)
    assert bool(jnp.isfinite(out_bf16))

    print("KERNEL_OK")
</pallas_src>

<mosaic_0001>
module attributes {stable_mosaic.version = 11 : i64} {
  func.func @_nll_kernel(%arg0: i32, %arg1: i32, %arg2: memref<8x8xf32, #tpu.memory_space<vmem>>, %arg3: memref<8x8xf32, #tpu.memory_space<vmem>>, %arg4: memref<1x1x8xf32, #tpu.memory_space<vmem>>, %arg5: memref<16x128xf32, #tpu.memory_space<vmem>>, %arg6: memref<1x128xf32, #tpu.memory_space<vmem>>, %arg7: memref<128x64xf32, #tpu.memory_space<vmem>>, %arg8: memref<1x64xf32, #tpu.memory_space<vmem>>, %arg9: memref<64x4xf32, #tpu.memory_space<vmem>>, %arg10: memref<1x4xf32, #tpu.memory_space<vmem>>, %arg11: memref<3x4xf32, #tpu.memory_space<vmem>>, %arg12: memref<1x1x1xf32, #tpu.memory_space<vmem>>, %arg13: memref<8x16xf32, #tpu.memory_space<vmem>>, %arg14: memref<1x1xf32, #tpu.memory_space<vmem>>) attributes {dimension_semantics = [#tpu.dimension_semantics<parallel>, #tpu.dimension_semantics<arbitrary>], iteration_bounds = array<i64: 1, 1>, scalar_prefetch = 0 : i64, scratch_operands = 2 : i64, tpu.core_type = #tpu.core_type<tc>, window_params = [{transform_indices = @transform_0, window_bounds = array<i64: 8, 8>}, {transform_indices = @transform_1, window_bounds = array<i64: 8, 8>}, {transform_indices = @transform_2, window_bounds = array<i64: 1, 1, 8>}, {pipeline_mode = #tpu.pipeline_mode<synchronous>, transform_indices = @transform_3, window_bounds = array<i64: 16, 128>}, {pipeline_mode = #tpu.pipeline_mode<synchronous>, transform_indices = @transform_4, window_bounds = array<i64: 1, 128>}, {pipeline_mode = #tpu.pipeline_mode<synchronous>, transform_indices = @transform_5, window_bounds = array<i64: 128, 64>}, {pipeline_mode = #tpu.pipeline_mode<synchronous>, transform_indices = @transform_6, window_bounds = array<i64: 1, 64>}, {pipeline_mode = #tpu.pipeline_mode<synchronous>, transform_indices = @transform_7, window_bounds = array<i64: 64, 4>}, {pipeline_mode = #tpu.pipeline_mode<synchronous>, transform_indices = @transform_8, window_bounds = array<i64: 1, 4>}, {pipeline_mode = #tpu.pipeline_mode<synchronous>, transform_indices = @transform_9, window_bounds = array<i64: 3, 4>}, {transform_indices = @transform_10, window_bounds = array<i64: 1, 1, 1>}]} {
    %c0_i32 = arith.constant 0 : i32
    %0 = arith.cmpi eq, %arg1, %c0_i32 : i32
    %1 = arith.extui %0 : i1 to i32
    %c0_i32_0 = arith.constant 0 : i32
    %2 = arith.cmpi ne, %1, %c0_i32_0 : i32
    scf.if %2 {
      %cst_51 = arith.constant 0.000000e+00 : f32
      %91 = vector.broadcast %cst_51 : f32 to vector<1x1xf32>
      %c0_52 = arith.constant 0 : index
      %c0_53 = arith.constant 0 : index
      %92 = vector.load %arg14[%c0_52, %c0_53] : memref<1x1xf32, #tpu.memory_space<vmem>>, vector<1x1xf32>
      tpu.vector_store %arg14[%c0_52, %c0_53], %91 {strides = array<i32>} : memref<1x1xf32, #tpu.memory_space<vmem>>, vector<1x1xf32>,
    } else {
    }
    %c0 = arith.constant 0 : index
    %c0_1 = arith.constant 0 : index
    %3 = vector.load %arg2[%c0, %c0_1] : memref<8x8xf32, #tpu.memory_space<vmem>>, vector<8x8xf32>
    %c0_2 = arith.constant 0 : index
    %c0_3 = arith.constant 0 : index
    %4 = vector.load %arg13[%c0_2, %c0_3] : memref<8x16xf32, #tpu.memory_space<vmem>>, vector<8x8xf32>
    tpu.vector_store %arg13[%c0_2, %c0_3], %3 {strides = array<i32>} : memref<8x16xf32, #tpu.memory_space<vmem>>, vector<8x8xf32>,
    %c0_4 = arith.constant 0 : index
    %c0_5 = arith.constant 0 : index
    %5 = vector.load %arg3[%c0_4, %c0_5] : memref<8x8xf32, #tpu.memory_space<vmem>>, vector<8x8xf32>
    %c0_6 = arith.constant 0 : index
    %c8 = arith.constant 8 : index
    %6 = vector.load %arg13[%c0_6, %c8] : memref<8x16xf32, #tpu.memory_space<vmem>>, vector<8x8xf32>
    tpu.vector_store %arg13[%c0_6, %c8], %5 {strides = array<i32>} : memref<8x16xf32, #tpu.memory_space<vmem>>, vector<8x8xf32>,
    %c0_7 = arith.constant 0 : index
    %c0_8 = arith.constant 0 : index
    %7 = vector.load %arg13[%c0_7, %c0_8] : memref<8x16xf32, #tpu.memory_space<vmem>>, vector<8x16xf32>
    %c0_9 = arith.constant 0 : index
    %c0_10 = arith.constant 0 : index
    %8 = vector.load %arg5[%c0_9, %c0_10] : memref<16x128xf32, #tpu.memory_space<vmem>>, vector<16x128xf32>
    %cst = arith.constant dense<0.000000e+00> : vector<8x128xf32>
    %9 = tpu.matmul %7, %8, %cst {dimension_numbers = #tpu.dot_dimension_numbers<[1], [0], [0], [1], [0, 0, 1, 1], [], []>} : vector<8x16xf32>, vector<16x128xf32>, vector<8x128xf32> -> vector<8x128xf32>
    %c0_11 = arith.constant 0 : index
    %c0_12 = arith.constant 0 : index
    %10 = vector.load %arg6[%c0_11, %c0_12] : memref<1x128xf32, #tpu.memory_space<vmem>>, vector<1x128xf32>
    %11 = vector.broadcast %10 : vector<1x128xf32> to vector<8x128xf32>
    %12 = arith.addf %9, %11 : vector<8x128xf32>
    %cst_13 = arith.constant 0.000000e+00 : f32
    %13 = vector.broadcast %cst_13 : f32 to vector<8x128xf32>
    %14 = arith.cmpf ogt, %12, %13 : vector<8x128xf32>
    %cst_14 = arith.constant 0.00999999977 : f32
    %15 = vector.broadcast %cst_14 : f32 to vector<8x128xf32>
    %16 = arith.mulf %15, %12 : vector<8x128xf32>
    %17 = arith.select %14, %12, %16 : vector<8x128xi1>, vector<8x128xf32>
    %c0_15 = arith.constant 0 : index
    %c0_16 = arith.constant 0 : index
    %18 = vector.load %arg7[%c0_15, %c0_16] : memref<128x64xf32, #tpu.memory_space<vmem>>, vector<128x64xf32>
    %cst_17 = arith.constant dense<0.000000e+00> : vector<8x64xf32>
    %19 = tpu.matmul %17, %18, %cst_17 {dimension_numbers = #tpu.dot_dimension_numbers<[1], [0], [0], [1], [0, 0, 1, 1], [], []>} : vector<8x128xf32>, vector<128x64xf32>, vector<8x64xf32> -> vector<8x64xf32>
    %c0_18 = arith.constant 0 : index
    %c0_19 = arith.constant 0 : index
    %20 = vector.load %arg8[%c0_18, %c0_19] : memref<1x64xf32, #tpu.memory_space<vmem>>, vector<1x64xf32>
    %21 = vector.broadcast %20 : vector<1x64xf32> to vector<8x64xf32>
    %22 = arith.addf %19, %21 : vector<8x64xf32>
    %cst_20 = arith.constant 0.000000e+00 : f32
    %23 = vector.broadcast %cst_20 : f32 to vector<8x64xf32>
    %24 = arith.cmpf ogt, %22, %23 : vector<8x64xf32>
    %cst_21 = arith.constant 0.00999999977 : f32
    %25 = vector.broadcast %cst_21 : f32 to vector<8x64xf32>
    %26 = arith.mulf %25, %22 : vector<8x64xf32>
    %27 = arith.select %24, %22, %26 : vector<8x64xi1>, vector<8x64xf32>
    %c0_22 = arith.constant 0 : index
    %c0_23 = arith.constant 0 : index
    %28 = vector.load %arg9[%c0_22, %c0_23] : memref<64x4xf32, #tpu.memory_space<vmem>>, vector<64x4xf32>
    %cst_24 = arith.constant dense<0.000000e+00> : vector<8x4xf32>
    %29 = tpu.matmul %27, %28, %cst_24 {dimension_numbers = #tpu.dot_dimension_numbers<[1], [0], [0], [1], [0, 0, 1, 1], [], []>} : vector<8x64xf32>, vector<64x4xf32>, vector<8x4xf32> -> vector<8x4xf32>
    %c0_25 = arith.constant 0 : index
    %c0_26 = arith.constant 0 : index
    %30 = vector.load %arg10[%c0_25, %c0_26] : memref<1x4xf32, #tpu.memory_space<vmem>>, vector<1x4xf32>
    %31 = vector.broadcast %30 : vector<1x4xf32> to vector<8x4xf32>
    %32 = arith.addf %29, %31 : vector<8x4xf32>
    %cst_27 = arith.constant dense<0xFF800000> : vector<8xf32>
    %33 = vector.multi_reduction <maximumf>, %32, %cst_27 [1] : vector<8x4xf32> to vector<8xf32>
    %34 = vector.shape_cast %33 : vector<8xf32> to vector<8x1xf32>
    %35 = tpu.iota {dimensions = array<i32: 1>} : vector<8x4xi32>
    %36 = vector.broadcast %34 : vector<8x1xf32> to vector<8x4xf32>
    %37 = arith.cmpf oge, %32, %36 : vector<8x4xf32>
    %c4_i32 = arith.constant 4 : i32
    %38 = vector.broadcast %c4_i32 : i32 to vector<8x4xi32>
    %39 = arith.select %37, %35, %38 : vector<8x4xi1>, vector<8x4xi32>
    %cst_28 = arith.constant dense<2147483647> : vector<8xi32>
    %40 = vector.multi_reduction <minsi>, %39, %cst_28 [1] : vector<8x4xi32> to vector<8xi32>
    %41 = vector.shape_cast %40 : vector<8xi32> to vector<8x1xi32>
    %42 = vector.broadcast %41 : vector<8x1xi32> to vector<8x4xi32>
    %43 = arith.cmpi eq, %35, %42 : vector<8x4xi32>
    %44 = arith.extui %43 : vector<8x4xi1> to vector<8x4xi32>
    %45 = arith.sitofp %44 : vector<8x4xi32> to vector<8x4xf32>
    %46 = tpu.iota {dimensions = array<i32: 0>} : vector<8x1xi32>
    %c1_i32 = arith.constant 1 : i32
    %47 = arith.muli %arg0, %c1_i32 : i32
    %48 = arith.addi %47, %arg1 : i32
    %c8_i32 = arith.constant 8 : i32
    %49 = arith.muli %48, %c8_i32 : i32
    %50 = vector.broadcast %49 : i32 to vector<8x1xi32>
    %51 = arith.addi %50, %46 : vector<8x1xi32>
    %c8_i32_29 = arith.constant 8 : i32
    %52 = vector.broadcast %c8_i32_29 : i32 to vector<8x1xi32>
    %53 = arith.cmpi slt, %51, %52 : vector<8x1xi32>
    %cst_30 = arith.constant 0.000000e+00 : f32
    %54 = vector.shape_cast %53 : vector<8x1xi1> to vector<8x1xi1>
    %55 = vector.broadcast %54 : vector<8x1xi1> to vector<8x4xi1>
    %56 = vector.broadcast %cst_30 : f32 to vector<8x4xf32>
    %57 = arith.select %55, %45, %56 : vector<8x4xi1>, vector<8x4xf32>
    %c0_31 = arith.constant 0 : index
    %c0_32 = arith.constant 0 : index
    %c0_33 = arith.constant 0 : index
    %58 = vector.load %arg4[%c0_31, %c0_32, %c0_33] : memref<1x1x8xf32, #tpu.memory_space<vmem>>, vector<1x1x8xf32>
    %59 = vector.shape_cast %58 : vector<1x1x8xf32> to vector<1x8xf32>
    %cst_34 = arith.constant dense<0.000000e+00> : vector<4xf32>
    %60 = vector.multi_reduction <add>, %57, %cst_34 [0] : vector<8x4xf32> to vector<4xf32>
    %61 = vector.shape_cast %60 : vector<4xf32> to vector<1x4xf32>
    %cst_35 = arith.constant dense<0.000000e+00> : vector<1x4xf32>
    %62 = tpu.matmul %59, %57, %cst_35 {dimension_numbers = #tpu.dot_dimension_numbers<[1], [0], [0], [1], [0, 0, 1, 1], [], []>} : vector<1x8xf32>, vector<8x4xf32>, vector<1x4xf32> -> vector<1x4xf32>
    %63 = arith.mulf %59, %59 : vector<1x8xf32>
    %cst_36 = arith.constant dense<0.000000e+00> : vector<1x4xf32>
    %64 = tpu.matmul %63, %57, %cst_36 {dimension_numbers = #tpu.dot_dimension_numbers<[1], [0], [0], [1], [0, 0, 1, 1], [], []>} : vector<1x8xf32>, vector<8x4xf32>, vector<1x4xf32> -> vector<1x4xf32>
    %c0_37 = arith.constant 0 : index
    %c0_38 = arith.constant 0 : index
    %65 = vector.load %arg11[%c0_37, %c0_38] : memref<3x4xf32, #tpu.memory_space<vmem>>, vector<1x4xf32>
    %c1 = arith.constant 1 : index
    %c0_39 = arith.constant 0 : index
    %66 = vector.load %arg11[%c1, %c0_39] : memref<3x4xf32, #tpu.memory_space<vmem>>, vector<1x4xf32>
    %c2 = arith.constant 2 : index
    %c0_40 = arith.constant 0 : index
    %67 = vector.load %arg11[%c2, %c0_40] : memref<3x4xf32, #tpu.memory_space<vmem>>, vector<1x4xf32>
    %68 = arith.mulf %67, %65 : vector<1x4xf32>
    %69 = arith.mulf %68, %65 : vector<1x4xf32>
    %70 = arith.subf %66, %69 : vector<1x4xf32>
    %71 = arith.mulf %61, %70 : vector<1x4xf32>
    %72 = arith.mulf %65, %67 : vector<1x4xf32>
    %cst_41 = arith.constant 2.000000e+00 : f32
    %73 = vector.broadcast %cst_41 : f32 to vector<1x4xf32>
    %74 = arith.mulf %73, %72 : vector<1x4xf32>
    %75 = arith.mulf %74, %62 : vector<1x4xf32>
    %76 = arith.addf %71, %75 : vector<1x4xf32>
    %77 = arith.mulf %67, %64 : vector<1x4xf32>
    %78 = arith.subf %76, %77 : vector<1x4xf32>
    %cst_42 = arith.constant 0.000000e+00 : f32
    %79 = vector.broadcast %cst_42 : f32 to vector<1x4xf32>
    %80 = arith.cmpf ogt, %61, %79 : vector<1x4xf32>
    %cst_43 = arith.constant 0.000000e+00 : f32
    %81 = vector.broadcast %cst_43 : f32 to vector<1x4xf32>
    %82 = arith.select %80, %78, %81 : vector<1x4xi1>, vector<1x4xf32>
    %c0_44 = arith.constant 0 : index
    %c0_45 = arith.constant 0 : index
    %83 = vector.load %arg14[%c0_44, %c0_45] : memref<1x1xf32, #tpu.memory_space<vmem>>, vector<1x1xf32>
    %cst_46 = arith.constant dense<0.000000e+00> : vector<1xf32>
    %84 = vector.multi_reduction <add>, %82, %cst_46 [1] : vector<1x4xf32> to vector<1xf32>
    %85 = vector.shape_cast %84 : vector<1xf32> to vector<1x1xf32>
    %86 = arith.addf %83, %85 : vector<1x1xf32>
    %c0_47 = arith.constant 0 : index
    %c0_48 = arith.constant 0 : index
    %87 = vector.load %arg14[%c0_47, %c0_48] : memref<1x1xf32, #tpu.memory_space<vmem>>, vector<1x1xf32>
    tpu.vector_store %arg14[%c0_47, %c0_48], %86 {strides = array<i32>} : memref<1x1xf32, #tpu.memory_space<vmem>>, vector<1x1xf32>,
    %c0_i32_49 = arith.constant 0 : i32
    %88 = arith.cmpi eq, %arg1, %c0_i32_49 : i32
    %89 = arith.extui %88 : i1 to i32
    %c0_i32_50 = arith.constant 0 : i32
    %90 = arith.cmpi ne, %89, %c0_i32_50 : i32
    scf.if %90 {
      %c0_51 = arith.constant 0 : index
      %c0_52 = arith.constant 0 : index
      %91 = vector.load %arg14[%c0_51, %c0_52] : memref<1x1xf32, #tpu.memory_space<vmem>>, vector<1x1xf32>
      %cst_53 = arith.constant -1.250000e-01 : f32
      %92 = vector.broadcast %cst_53 : f32 to vector<1x1xf32>
      %93 = arith.mulf %91, %92 : vector<1x1xf32>
      %94 = vector.shape_cast %93 : vector<1x1xf32> to vector<1x1x1xf32>
      %c0_54 = arith.constant 0 : index
      %c0_55 = arith.constant 0 : index
      %c0_56 = arith.constant 0 : index
      %95 = vector.load %arg12[%c0_54, %c0_55, %c0_56] : memref<1x1x1xf32, #tpu.memory_space<vmem>>, vector<1x1x1xf32>
      tpu.vector_store %arg12[%c0_54, %c0_55, %c0_56], %94 {strides = array<i32>} : memref<1x1x1xf32, #tpu.memory_space<vmem>>, vector<1x1x1xf32>,
    } else {
    }
    return
  }
  func.func @transform_0(%arg0: i32, %arg1: i32) -> (i32, i32) {
    %c1_i32 = arith.constant 1 : i32
    %0 = arith.muli %arg0, %c1_i32 : i32
    %1 = arith.addi %0, %arg1 : i32
    %c0_i32 = arith.constant 0 : i32
    %2 = arith.minsi %1, %c0_i32 : i32
    %c0_i32_0 = arith.constant 0 : i32
    %c0_i32_1 = arith.constant 0 : i32
    return %2, %c0_i32_0 : i32, i32
  }
  func.func @transform_1(%arg0: i32, %arg1: i32) -> (i32, i32) {
    %c1_i32 = arith.constant 1 : i32
    %0 = arith.muli %arg0, %c1_i32 : i32
    %1 = arith.addi %0, %arg1 : i32
    %c0_i32 = arith.constant 0 : i32
    %2 = arith.minsi %1, %c0_i32 : i32
    %c0_i32_0 = arith.constant 0 : i32
    %c0_i32_1 = arith.constant 0 : i32
    return %2, %c0_i32_0 : i32, i32
  }
  func.func @transform_2(%arg0: i32, %arg1: i32) -> (i32, i32, i32) {
    %c1_i32 = arith.constant 1 : i32
    %0 = arith.muli %arg0, %c1_i32 : i32
    %1 = arith.addi %0, %arg1 : i32
    %c0_i32 = arith.constant 0 : i32
    %2 = arith.minsi %1, %c0_i32 : i32
    %c0_i32_0 = arith.constant 0 : i32
    %c0_i32_1 = arith.constant 0 : i32
    %c0_i32_2 = arith.constant 0 : i32
    return %2, %c0_i32_0, %c0_i32_1 : i32, i32, i32
  }
  func.func @transform_3(%arg0: i32, %arg1: i32) -> (i32, i32) {
    %c0_i32 = arith.constant 0 : i32
    %c0_i32_0 = arith.constant 0 : i32
    %c0_i32_1 = arith.constant 0 : i32
    return %c0_i32, %c0_i32_0 : i32, i32
  }
  func.func @transform_4(%arg0: i32, %arg1: i32) -> (i32, i32) {
    %c0_i32 = arith.constant 0 : i32
    %c0_i32_0 = arith.constant 0 : i32
    %c0_i32_1 = arith.constant 0 : i32
    return %c0_i32, %c0_i32_0 : i32, i32
  }
  func.func @transform_5(%arg0: i32, %arg1: i32) -> (i32, i32) {
    %c0_i32 = arith.constant 0 : i32
    %c0_i32_0 = arith.constant 0 : i32
    %c0_i32_1 = arith.constant 0 : i32
    return %c0_i32, %c0_i32_0 : i32, i32
  }
  func.func @transform_6(%arg0: i32, %arg1: i32) -> (i32, i32) {
    %c0_i32 = arith.constant 0 : i32
    %c0_i32_0 = arith.constant 0 : i32
    %c0_i32_1 = arith.constant 0 : i32
    return %c0_i32, %c0_i32_0 : i32, i32
  }
  func.func @transform_7(%arg0: i32, %arg1: i32) -> (i32, i32) {
    %c0_i32 = arith.constant 0 : i32
    %c0_i32_0 = arith.constant 0 : i32
    %c0_i32_1 = arith.constant 0 : i32
    return %c0_i32, %c0_i32_0 : i32, i32
  }
  func.func @transform_8(%arg0: i32, %arg1: i32) -> (i32, i32) {
    %c0_i32 = arith.constant 0 : i32
    %c0_i32_0 = arith.constant 0 : i32
    %c0_i32_1 = arith.constant 0 : i32
    return %c0_i32, %c0_i32_0 : i32, i32
  }
  func.func @transform_9(%arg0: i32, %arg1: i32) -> (i32, i32) {
    %c0_i32 = arith.constant 0 : i32
    %c0_i32_0 = arith.constant 0 : i32
    %c0_i32_1 = arith.constant 0 : i32
    return %c0_i32, %c0_i32_0 : i32, i32
  }
  func.func @transform_10(%arg0: i32, %arg1: i32) -> (i32, i32, i32) {
    %c0_i32 = arith.constant 0 : i32
    %c0_i32_0 = arith.constant 0 : i32
    %c0_i32_1 = arith.constant 0 : i32
    return %arg0, %c0_i32, %c0_i32_0 : i32, i32, i32
  }
}

</mosaic_0001>

<llo_original>
// kernel: tpu_custom_call.1
$region0: #{tpu_custom_call.1}
  #allocation0 [shape = 'u32[]', space=smem, size = 0x4, offset = 0x4, fixed_abs, tag = 'smem constant byte address 0x4 - core index']
  #allocation1 [shape = 'u32[144,128]{1,0:T(1,128)}', space=vmem, size = 0x12000, scoped, tag = 'internal scratch']
  #allocation2 [shape = 'f32[8,16]{1,0:T(8,128)}', space=vmem, size = 0x1000, scoped, tag = 'scratch operand']
  #allocation3 [shape = 'f32[1,1]{1,0:T(1,128)}', space=vmem, size = 0x200, scoped, tag = 'scratch operand']
  %s0 = inlined_call_operand.vmem [shape: f32[8,8], index: 0, kind: input, shape index: {}]
  %s1 = inlined_call_operand.vmem [shape: f32[8,8], index: 1, kind: input, shape index: {}]
  %s2 = inlined_call_operand.vmem [shape: f32[1,1,8], index: 2, kind: input, shape index: {}]
  %s3 = inlined_call_operand.vmem [shape: f32[16,128], index: 3, kind: input, shape index: {}]
  %s4 = inlined_call_operand.vmem [shape: f32[1,128], index: 4, kind: input, shape index: {}]
  %s5 = inlined_call_operand.vmem [shape: f32[128,64], index: 5, kind: input, shape index: {}]
  %s6 = inlined_call_operand.vmem [shape: f32[1,64], index: 6, kind: input, shape index: {}]
  %s7 = inlined_call_operand.vmem [shape: f32[64,4], index: 7, kind: input, shape index: {}]
  %s8 = inlined_call_operand.vmem [shape: f32[1,4], index: 8, kind: input, shape index: {}]
  %s9 = inlined_call_operand.vmem [shape: f32[3,4], index: 9, kind: input, shape index: {}]
  %s10 = inlined_call_operand.hbm [shape: f32[1,1,1], index: 10, kind: output, shape index: {}]
  %s11 = sld [smem:[#allocation0]]
  $region58: #{tpu_custom_call.1} parent=0
    _
  %s13 = ssub.s32 1, %s11
  %s14 = scalar_select 0, %s13, %s11
  $region1: #{tpu_custom_call.1} parent=0
    #allocation4 [shape = 'u8[512]{0}', space=vmem, size = 0x400, scoped, tag = 'output window, operand 0, single buffered']
    #allocation5 [shape = 's32[1]{0}', space=sflag, size = 0x4, scoped, tag = 'scoped memory for tpu_custom_call.1']
    %15 = vsyncpa [#allocation5], 0
    // Predicated region
    $region2: #{tpu_custom_call.1} parent=1 // pred_check
      _
    $region3: #{tpu_custom_call.1} parent=1 // pred_check_branch
      %17 = sbr.rel (0) target = $region5
    $region4: #{tpu_custom_call.1} parent=1 // pred_region
      %s18 = sadd.s32 0, 0
      %p19 = scmp.lt.s32.totalorder %s18, 0
      %s20 = scalar_select %p19, %s18, 0
      %p21 = scmp.lt.s32.totalorder %s20, 0
      %s22 = scalar_select %p21, %s20, 0
      %s23 = smul.addr %s22, 8
      %s24 = scalar_lea.vmem %s0, %s23
      %s25 = sadd.s32 0, 0
      %p26 = scmp.lt.s32.totalorder %s25, 0
      %s27 = scalar_select %p26, %s25, 0
    $region5: #{tpu_custom_call.1} parent=1 // pred_fallthru
      _
    // Predicated region
    $region6: #{tpu_custom_call.1} parent=1 // pred_check
      _
    $region7: #{tpu_custom_call.1} parent=1 // pred_check_branch
      %29 = sbr.rel (0) target = $region9
    $region8: #{tpu_custom_call.1} parent=1 // pred_region
      %s30 = sadd.s32 0, 0
      %p31 = scmp.lt.s32.totalorder %s30, 0
      %s32 = scalar_select %p31, %s30, 0
      %p33 = scmp.lt.s32.totalorder %s32, 0
      %s34 = scalar_select %p33, %s32, 0
      %s35 = smul.addr %s34, 8
      %s36 = scalar_lea.vmem %s1, %s35
      %s37 = sadd.s32 0, 0
      %p38 = scmp.lt.s32.totalorder %s37, 0
      %s39 = scalar_select %p38, %s37, 0
    $region9: #{tpu_custom_call.1} parent=1 // pred_fallthru
      _
    // Predicated region
    $region10: #{tpu_custom_call.1} parent=1 // pred_check
      _
    $region11: #{tpu_custom_call.1} parent=1 // pred_check_branch
      %41 = sbr.rel (0) target = $region13
    $region12: #{tpu_custom_call.1} parent=1 // pred_region
      %s42 = sadd.s32 0, 0
      %p43 = scmp.lt.s32.totalorder %s42, 0
      %s44 = scalar_select %p43, %s42, 0
      %p45 = scmp.lt.s32.totalorder %s44, 0
      %s46 = scalar_select %p45, %s44, 0
      %s47 = scalar_lea.vmem %s2, %s46
      %s48 = sadd.s32 0, 0
      %p49 = scmp.lt.s32.totalorder %s48, 0
      %s50 = scalar_select %p49, %s48, 0
    $region13: #{tpu_custom_call.1} parent=1 // pred_fallthru
      _
    // Predicated region
    $region14: #{tpu_custom_call.1} parent=1 // pred_check
      _
    $region15: #{tpu_custom_call.1} parent=1 // pred_check_branch
      %52 = sbr.rel (0) target = $region17
    $region16: #{tpu_custom_call.1} parent=1 // pred_region
      _
    $region17: #{tpu_custom_call.1} parent=1 // pred_fallthru
      _
    // Predicated region
    $region18: #{tpu_custom_call.1} parent=1 // pred_check
      _
    $region19: #{tpu_custom_call.1} parent=1 // pred_check_branch
      %54 = sbr.rel (0) target = $region21
    $region20: #{tpu_custom_call.1} parent=1 // pred_region
      _
    $region21: #{tpu_custom_call.1} parent=1 // pred_fallthru
      _
    // Predicated region
    $region22: #{tpu_custom_call.1} parent=1 // pred_check
      _
    $region23: #{tpu_custom_call.1} parent=1 // pred_check_branch
      %56 = sbr.rel (0) target = $region25
    $region24: #{tpu_custom_call.1} parent=1 // pred_region
      _
    $region25: #{tpu_custom_call.1} parent=1 // pred_fallthru
      _
    // Predicated region
    $region26: #{tpu_custom_call.1} parent=1 // pred_check
      _
    $region27: #{tpu_custom_call.1} parent=1 // pred_check_branch
      %58 = sbr.rel (0) target = $region29
    $region28: #{tpu_custom_call.1} parent=1 // pred_region
      _
    $region29: #{tpu_custom_call.1} parent=1 // pred_fallthru
      _
    // Predicated region
    $region30: #{tpu_custom_call.1} parent=1 // pred_check
      _
    $region31: #{tpu_custom_call.1} parent=1 // pred_check_branch
      %60 = sbr.rel (0) target = $region33
    $region32: #{tpu_custom_call.1} parent=1 // pred_region
      _
    $region33: #{tpu_custom_call.1} parent=1 // pred_fallthru
      _
    // Predicated region
    $region34: #{tpu_custom_call.1} parent=1 // pred_check
      _
    $region35: #{tpu_custom_call.1} parent=1 // pred_check_branch
      %62 = sbr.rel (0) target = $region37
    $region36: #{tpu_custom_call.1} parent=1 // pred_region
      _
    $region37: #{tpu_custom_call.1} parent=1 // pred_fallthru
      _
    // Predicated region
    $region38: #{tpu_custom_call.1} parent=1 // pred_check
      _
    $region39: #{tpu_custom_call.1} parent=1 // pred_check_branch
      %64 = sbr.rel (0) target = $region41
    $region40: #{tpu_custom_call.1} parent=1 // pred_region
      _
    $region41: #{tpu_custom_call.1} parent=1 // pred_fallthru
      _
    %s65 = sadd.s32 0, 0
    %p66 = scmp.lt.s32.totalorder %s65, 0
    %s67 = scalar_select %p66, %s65, 0
    %p68 = scmp.lt.s32.totalorder %s67, 0
    %s69 = scalar_select %p68, %s67, 0
    %s70 = smul.addr %s69, 8
    %s71 = scalar_lea.vmem %s0, %s70
    %s72 = sadd.s32 0, 0
    %p73 = scmp.lt.s32.totalorder %s72, 0
    %s74 = scalar_select %p73, %s72, 0
    %p75 = scmp.lt.s32.totalorder %s74, 0
    %s76 = scalar_select %p75, %s74, 0
    %s77 = smul.addr %s76, 8
    %s78 = scalar_lea.vmem %s1, %s77
    %s79 = sadd.s32 0, 0
    %p80 = scmp.lt.s32.totalorder %s79, 0
    %s81 = scalar_select %p80, %s79, 0
    %p82 = scmp.lt.s32.totalorder %s81, 0
    %s83 = scalar_select %p82, %s81, 0
    %s84 = scalar_lea.vmem %s2, %s83
    %s85 = sadd.s32 0, 0
    %p86 = scmp.lt.s32.totalorder %s85, 0
    %s87 = scalar_select %p86, %s85, 0
    %p88 = scmp.lt.s32.totalorder %s87, 0
    %s89 = scalar_select %p88, %s87, 0
    %s90 = smul.addr %s89, 8
    %s91 = scalar_lea.vmem %s0, %s90
    %s92 = sadd.s32 0, 0
    %p93 = scmp.lt.s32.totalorder %s92, 0
    %s94 = scalar_select %p93, %s92, 0
    %s95 = sadd.s32 0, 0
    %p96 = scmp.lt.s32.totalorder %s95, 0
    %s97 = scalar_select %p96, %s95, 0
    %p98 = scmp.lt.s32.totalorder %s97, 0
    %s99 = scalar_select %p98, %s97, 0
    %s100 = smul.addr %s99, 8
    %s101 = scalar_lea.vmem %s1, %s100
    %s102 = sadd.s32 0, 0
    %p103 = scmp.lt.s32.totalorder %s102, 0
    %s104 = scalar_select %p103, %s102, 0
    %s105 = sadd.s32 0, 0
    %p106 = scmp.lt.s32.totalorder %s105, 0
    %s107 = scalar_select %p106, %s105, 0
    %p108 = scmp.lt.s32.totalorder %s107, 0
    %s109 = scalar_select %p108, %s107, 0
    %s110 = scalar_lea.vmem %s2, %s109
    %s111 = sadd.s32 0, 0
    %p112 = scmp.lt.s32.totalorder %s111, 0
    %s113 = scalar_select %p112, %s111, 0
    %p114 = scmp.eq.s32.totalorder 0, 0
    // Predicated region
    $region42: #{tpu_custom_call.1} parent=1 // pred_check
      %p115 = pneg %p114
    $region43: #{tpu_custom_call.1} parent=1 // pred_check_branch
      %117 = sbr.rel (%p115) target = $region45
    $region44: #{tpu_custom_call.1} parent=1 // pred_region
      %vm118 = vcmask 0
      %119 = vst.msk [vmem:[#allocation3] sm:$0x1] %vm118, 0.0
    $region45: #{tpu_custom_call.1} parent=1 // pred_fallthru
      _
    %v120 = vld [vmem:[%s91] sm:$0xff]
    %vm121 = vcmask 64512
    %122 = vst.msk [vmem:[#allocation2] sm:$0xff] %vm121, %v120
    %v123 = vld [vmem:[%s101] sm:$0xff]
    %125 = vrot.lane.b32.xlu0 %v123, 8
    %v126 = vpop.permute.xlu0 %125
    %vm128 = vcmask 130112
    %129 = vst.msk [vmem:[#allocation2] sm:$0xff] %vm128, %v126
    %v130 = vld [vmem:[#allocation2] sm:$0xff]
    %v131 = vld [vmem:[%s3] sm:$0xff]
    %v132 = vld [vmem:[%s3 + $0x8] sm:$0xff]
    %v133 = vld [vmem:[%s4] sm:$0x1]
    %v135 = vlaneseq
    %v136 = vshrl.u32 %v135, 7
    %v137 = vsub.s32 0, %v136
    %v138 = vrot.slane %v133, %v137
    %vm140 = vcmask 130048
    %v142 = vsel %vm140, %v130, 0
    %144 = vmatprep.subr.mxu0 0.0
    %145 = vmatpush1.msra.mxu0 %v131
    %146 = vmatprep.subr.mxu0 0.0
    %147 = vmatpush1.msra.mxu0 %v132
    %148 = vmatprep.subr.mxu0 0.0
    %149 = vmatpush1.msra.mxu0 0.0
    %150 = vmatprep.subr.mxu0 0.0
    %151 = vmatpush1.msra.mxu0 0.0
    %152 = vmatprep.subr.mxu0 0.0
    %153 = vmatpush1.msra.mxu0 0.0
    %154 = vmatprep.subr.mxu0 0.0
    %155 = vmatpush1.msra.mxu0 0.0
    %156 = vmatprep.subr.mxu0 0.0
    %157 = vmatpush1.msra.mxu0 0.0
    %158 = vmatprep.subr.mxu0 0.0
    %159 = vmatpush1.msra.mxu0 0.0
    %160 = vmatprep.subr.mxu0 0.0
    %161 = vmatpush1.msra.mxu0 0.0
    %162 = vmatprep.subr.mxu0 0.0
    %163 = vmatpush1.msra.mxu0 0.0
    %164 = vmatprep.subr.mxu0 0.0
    %165 = vmatpush1.msra.mxu0 0.0
    %166 = vmatprep.subr.mxu0 0.0
    %167 = vmatpush1.msra.mxu0 0.0
    %168 = vmatprep.subr.mxu0 0.0
    %169 = vmatpush1.msra.mxu0 0.0
    %170 = vmatprep.subr.mxu0 0.0
    %171 = vmatpush1.msra.mxu0 0.0
    %172 = vmatprep.subr.mxu0 0.0
    %173 = vmatpush1.msra.mxu0 0.0
    %174 = vmatprep.subr.mxu0 0.0
    %175 = vmatpush1.msra.mxu0 0.0
    %176 = vmatprep.subr.mxu0 0.0
    %177 = vmatpush1.msra.mxu0 0.0
    %178 = vmatprep.subr.mxu0 0.0
    %179 = vmatpush1.msra.mxu0 0.0
    %180 = vmatprep.subr.mxu0 0.0
    %181 = vmatpush1.msra.mxu0 0.0
    %182 = vmatprep.subr.mxu0 0.0
    %183 = vmatpush1.msra.mxu0 0.0
    %184 = vmatprep.subr.mxu0 0.0
    %185 = vmatpush1.msra.mxu0 0.0
    %186 = vmatprep.subr.mxu0 0.0
    %187 = vmatpush1.msra.mxu0 0.0
    %188 = vmatprep.subr.mxu0 0.0
    %189 = vmatpush1.msra.mxu0 0.0
    %190 = vmatprep.subr.mxu0 0.0
    %191 = vmatpush1.msra.mxu0 0.0
    %192 = vmatprep.subr.mxu0 0.0
    %193 = vmatpush1.msra.mxu0 0.0
    %194 = vmatprep.subr.mxu0 0.0
    %195 = vmatpush1.msra.mxu0 0.0
    %196 = vmatprep.subr.mxu0 0.0
    %197 = vmatpush1.msra.mxu0 0.0
    %198 = vmatprep.subr.mxu0 0.0
    %199 = vmatpush1.msra.mxu0 0.0
    %200 = vmatprep.subr.mxu0 0.0
    %201 = vmatpush1.msra.mxu0 0.0
    %202 = vmatprep.subr.mxu0 0.0
    %203 = vmatpush1.msra.mxu0 0.0
    %204 = vmatprep.subr.mxu0 0.0
    %205 = vmatpush1.msra.mxu0 0.0
    %206 = vmatprep.subr.mxu0 0.0
    %207 = vmatpush1.msra.mxu0 0.0
    %208 = vmatprep.mubr.f32.mxu0 0.0
    %209 = vmatmul.mubr.f32.gmra.mrb[0].mxu0 %v142
    %v210 = vpop.f32.mrb[0].mxu0
    %v211 = vadd.f32 %v138, %v210
    %v212 = vpop.f32.mrb[0].mxu0
    %213 = vdwg.mxu0
    %vm214 = vcmp.gt.f32.partialorder %v211, 0.0
    %v215 = vmul.f32 %v211, 0.01
    %v216 = vsel %vm214, %v211, %v215
    %v217 = vld [vmem:[%s5] sm:$0xff]
    %v218 = vld [vmem:[%s5 + $0x8] sm:$0xff]
    %v219 = vld [vmem:[%s5 + $0x10] sm:$0xff]
    %v220 = vld [vmem:[%s5 + $0x18] sm:$0xff]
    %v221 = vld [vmem:[%s5 + $0x20] sm:$0xff]
    %v222 = vld [vmem:[%s5 + $0x28] sm:$0xff]
    %v223 = vld [vmem:[%s5 + $0x30] sm:$0xff]
    %v224 = vld [vmem:[%s5 + $0x38] sm:$0xff]
    %v225 = vld [vmem:[%s5 + $0x40] sm:$0xff]
    %v226 = vld [vmem:[%s5 + $0x48] sm:$0xff]
    %v227 = vld [vmem:[%s5 + $0x50] sm:$0xff]
    %v228 = vld [vmem:[%s5 + $0x58] sm:$0xff]
    %v229 = vld [vmem:[%s5 + $0x60] sm:$0xff]
    %v230 = vld [vmem:[%s5 + $0x68] sm:$0xff]
    %v231 = vld [vmem:[%s5 + $0x70] sm:$0xff]
    %v232 = vld [vmem:[%s5 + $0x78] sm:$0xff]
    %v233 = vld [vmem:[%s6] sm:$0x1]
    %v235 = vlaneseq
    %v236 = vshrl.u32 %v235, 7
    %v237 = vsub.s32 0, %v236
    %v238 = vrot.slane %v233, %v237
    %240 = vmatprep.subr.mxu0 0.0
    %241 = vmatpush1.msra.mxu0 %v217
    %242 = vmatprep.subr.mxu0 0.0
    %243 = vmatpush1.msra.mxu0 %v218
    %244 = vmatprep.subr.mxu0 0.0
    %245 = vmatpush1.msra.mxu0 %v219
    %246 = vmatprep.subr.mxu0 0.0
    %247 = vmatpush1.msra.mxu0 %v220
    %248 = vmatprep.subr.mxu0 0.0
    %249 = vmatpush1.msra.mxu0 %v221
    %250 = vmatprep.subr.mxu0 0.0
    %251 = vmatpush1.msra.mxu0 %v222
    %252 = vmatprep.subr.mxu0 0.0
    %253 = vmatpush1.msra.mxu0 %v223
    %254 = vmatprep.subr.mxu0 0.0
    %255 = vmatpush1.msra.mxu0 %v224
    %256 = vmatprep.subr.mxu0 0.0
    %257 = vmatpush1.msra.mxu0 %v225
    %258 = vmatprep.subr.mxu0 0.0
    %259 = vmatpush1.msra.mxu0 %v226
    %260 = vmatprep.subr.mxu0 0.0
    %261 = vmatpush1.msra.mxu0 %v227
    %262 = vmatprep.subr.mxu0 0.0
    %263 = vmatpush1.msra.mxu0 %v228
    %264 = vmatprep.subr.mxu0 0.0
    %265 = vmatpush1.msra.mxu0 %v229
    %266 = vmatprep.subr.mxu0 0.0
    %267 = vmatpush1.msra.mxu0 %v230
    %268 = vmatprep.subr.mxu0 0.0
    %269 = vmatpush1.msra.mxu0 %v231
    %270 = vmatprep.subr.mxu0 0.0
    %271 = vmatpush1.msra.mxu0 %v232
    %272 = vmatprep.subr.mxu0 0.0
    %273 = vmatpush1.msra.mxu0 0.0
    %274 = vmatprep.subr.mxu0 0.0
    %275 = vmatpush1.msra.mxu0 0.0
    %276 = vmatprep.subr.mxu0 0.0
    %277 = vmatpush1.msra.mxu0 0.0
    %278 = vmatprep.subr.mxu0 0.0
    %279 = vmatpush1.msra.mxu0 0.0
    %280 = vmatprep.subr.mxu0 0.0
    %281 = vmatpush1.msra.mxu0 0.0
    %282 = vmatprep.subr.mxu0 0.0
    %283 = vmatpush1.msra.mxu0 0.0
    %284 = vmatprep.subr.mxu0 0.0
    %285 = vmatpush1.msra.mxu0 0.0
    %286 = vmatprep.subr.mxu0 0.0
    %287 = vmatpush1.msra.mxu0 0.0
    %288 = vmatprep.subr.mxu0 0.0
    %289 = vmatpush1.msra.mxu0 0.0
    %290 = vmatprep.subr.mxu0 0.0
    %291 = vmatpush1.msra.mxu0 0.0
    %292 = vmatprep.subr.mxu0 0.0
    %293 = vmatpush1.msra.mxu0 0.0
    %294 = vmatprep.subr.mxu0 0.0
    %295 = vmatpush1.msra.mxu0 0.0
    %296 = vmatprep.subr.mxu0 0.0
    %297 = vmatpush1.msra.mxu0 0.0
    %298 = vmatprep.subr.mxu0 0.0
    %299 = vmatpush1.msra.mxu0 0.0
    %300 = vmatprep.subr.mxu0 0.0
    %301 = vmatpush1.msra.mxu0 0.0
    %302 = vmatprep.subr.mxu0 0.0
    %303 = vmatpush1.msra.mxu0 0.0
    %304 = vmatprep.mubr.f32.mxu0 0.0
    %305 = vmatmul.mubr.f32.gmra.mrb[0].mxu0 %v216
    %v306 = vpop.f32.mrb[0].mxu0
    %v307 = vadd.f32 %v238, %v306
    %v308 = vpop.f32.mrb[0].mxu0
    %309 = vdwg.mxu0
    %vm310 = vcmp.gt.f32.partialorder %v307, 0.0
    %v311 = vmul.f32 %v307, 0.01
    %v312 = vsel %vm310, %v307, %v311
    %v313 = vld [vmem:[%s7] sm:$0xff]
    %v314 = vld [vmem:[%s7 + $0x8] sm:$0xff]
    %v315 = vld [vmem:[%s7 + $0x10] sm:$0xff]
    %v316 = vld [vmem:[%s7 + $0x18] sm:$0xff]
    %v317 = vld [vmem:[%s7 + $0x20] sm:$0xff]
    %v318 = vld [vmem:[%s7 + $0x28] sm:$0xff]
    %v319 = vld [vmem:[%s7 + $0x30] sm:$0xff]
    %v320 = vld [vmem:[%s7 + $0x38] sm:$0xff]
    %v321 = vld [vmem:[%s8] sm:$0x1]
    %v323 = vlaneseq
    %v324 = vshrl.u32 %v323, 7
    %v325 = vsub.s32 0, %v324
    %v326 = vrot.slane %v321, %v325
    %vm328 = vcmask 523264
    %v330 = vsel %vm328, %v312, 0
    %332 = vmatprep.subr.mxu0 0.0
    %333 = vmatpush1.msra.mxu0 %v313
    %334 = vmatprep.subr.mxu0 0.0
    %335 = vmatpush1.msra.mxu0 %v314
    %336 = vmatprep.subr.mxu0 0.0
    %337 = vmatpush1.msra.mxu0 %v315
    %338 = vmatprep.subr.mxu0 0.0
    %339 = vmatpush1.msra.mxu0 %v316
    %340 = vmatprep.subr.mxu0 0.0
    %341 = vmatpush1.msra.mxu0 %v317
    %342 = vmatprep.subr.mxu0 0.0
    %343 = vmatpush1.msra.mxu0 %v318
    %344 = vmatprep.subr.mxu0 0.0
    %345 = vmatpush1.msra.mxu0 %v319
    %346 = vmatprep.subr.mxu0 0.0
    %347 = vmatpush1.msra.mxu0 %v320
    %348 = vmatprep.subr.mxu0 0.0
    %349 = vmatpush1.msra.mxu0 0.0
    %350 = vmatprep.subr.mxu0 0.0
    %351 = vmatpush1.msra.mxu0 0.0
    %352 = vmatprep.subr.mxu0 0.0
    %353 = vmatpush1.msra.mxu0 0.0
    %354 = vmatprep.subr.mxu0 0.0
    %355 = vmatpush1.msra.mxu0 0.0
    %356 = vmatprep.subr.mxu0 0.0
    %357 = vmatpush1.msra.mxu0 0.0
    %358 = vmatprep.subr.mxu0 0.0
    %359 = vmatpush1.msra.mxu0 0.0
    %360 = vmatprep.subr.mxu0 0.0
    %361 = vmatpush1.msra.mxu0 0.0
    %362 = vmatprep.subr.mxu0 0.0
    %363 = vmatpush1.msra.mxu0 0.0
    %364 = vmatprep.subr.mxu0 0.0
    %365 = vmatpush1.msra.mxu0 0.0
    %366 = vmatprep.subr.mxu0 0.0
    %367 = vmatpush1.msra.mxu0 0.0
    %368 = vmatprep.subr.mxu0 0.0
    %369 = vmatpush1.msra.mxu0 0.0
    %370 = vmatprep.subr.mxu0 0.0
    %371 = vmatpush1.msra.mxu0 0.0
    %372 = vmatprep.subr.mxu0 0.0
    %373 = vmatpush1.msra.mxu0 0.0
    %374 = vmatprep.subr.mxu0 0.0
    %375 = vmatpush1.msra.mxu0 0.0
    %376 = vmatprep.subr.mxu0 0.0
    %377 = vmatpush1.msra.mxu0 0.0
    %378 = vmatprep.subr.mxu0 0.0
    %379 = vmatpush1.msra.mxu0 0.0
    %380 = vmatprep.subr.mxu0 0.0
    %381 = vmatpush1.msra.mxu0 0.0
    %382 = vmatprep.subr.mxu0 0.0
    %383 = vmatpush1.msra.mxu0 0.0
    %384 = vmatprep.subr.mxu0 0.0
    %385 = vmatpush1.msra.mxu0 0.0
    %386 = vmatprep.subr.mxu0 0.0
    %387 = vmatpush1.msra.mxu0 0.0
    %388 = vmatprep.subr.mxu0 0.0
    %389 = vmatpush1.msra.mxu0 0.0
    %390 = vmatprep.subr.mxu0 0.0
    %391 = vmatpush1.msra.mxu0 0.0
    %392 = vmatprep.subr.mxu0 0.0
    %393 = vmatpush1.msra.mxu0 0.0
    %394 = vmatprep.subr.mxu0 0.0
    %395 = vmatpush1.msra.mxu0 0.0
    %396 = vmatprep.mubr.f32.mxu0 0.0
    %397 = vmatmul.mubr.f32.gmra.mrb[0].mxu0 %v330
    %v398 = vpop.f32.mrb[0].mxu0
    %v399 = vadd.f32 %v326, %v398
    %v400 = vpop.f32.mrb[0].mxu0
    %401 = vdwg.mxu0
    %vm402 = vcmask 31744
    %v403 = vsel %vm402, %v399, -inf
    %404 = vmax.xlane.f32.xlu0 %v403
    %v405 = vpop.xlane.xlu0 %404
    %v406 = vlaneseq
    %v407 = vand.u32 %v406, 127
    %vm408 = vcmp.ge.f32.partialorder %v399, %v405
    %v409 = vsel %vm408, %v407, 4
    %v410 = vsel %vm402, %v409, 2147483647
    %v411 = vand.u32 %v410, 65535
    %v412 = vshra.s32 %v410, 16
    %v413 = vcvt.s32.f32 %v411
    %v414 = vcvt.s32.f32 %v412
    %415 = vmin.xlane.f32.xlu0 %v414
    %v416 = vpop.xlane.xlu0 %415
    %vm417 = vcmp.eq.f32.partialorder %v414, %v416
    %v418 = vsel %vm417, %v413, inf
    %419 = vmin.xlane.f32.xlu0 %v418
    %v420 = vpop.xlane.xlu0 %419
    %v421 = vcvt.f32.s32 %v420
    %v422 = vcvt.f32.s32 %v416
    %v423 = vshll.u32 %v422, 16
    %v424 = vadd.s32 %v423, %v421
    %vm425 = vcmp.eq.s32.totalorder %v407, %v424
    %v426 = vsel %vm425, 1, 0
    %v427 = vcvt.s32.f32 %v426
    %v428 = vlaneseq
    %v429 = vshrl.u32 %v428, 7
    %s430 = sadd.s32 0, 0
    %s431 = smul.u32 %s430, 8
    %v432 = vstv %s431
    %v433 = vadd.s32 %v432, %v429
    %vm434 = vcmp.lt.s32.totalorder %v433, 8
    %v435 = vsel %vm434, 1, 0
    %vm436 = vcmp.eq.s32.totalorder %v435, 1
    %v437 = vsel %vm436, %v427, 0.0
    %v438 = vld [vmem:[%s110] sm:$0x1]
    %v439 = vsel %vm402, %v437, 0.0
    %v440 = vrot.slane %v439, 4
    %v441 = vadd.f32 %v439, %v440
    %v442 = vrot.slane %v441, 2
    %v443 = vadd.f32 %v441, %v442
    %v444 = vrot.slane %v443, 1
    %v445 = vadd.f32 %v443, %v444
    %v447 = vsel %vm121, %v438, 0
    %449 = vmatprep.subr.mxu0 0.0
    %450 = vmatpush1.msra.mxu0 %v437
    %451 = vmatprep.subr.mxu0 0.0
    %452 = vmatpush1.msra.mxu0 0.0
    %453 = vmatprep.subr.mxu0 0.0
    %454 = vmatpush1.msra.mxu0 0.0
    %455 = vmatprep.subr.mxu0 0.0
    %456 = vmatpush1.msra.mxu0 0.0
    %457 = vmatprep.subr.mxu0 0.0
    %458 = vmatpush1.msra.mxu0 0.0
    %459 = vmatprep.subr.mxu0 0.0
    %460 = vmatpush1.msra.mxu0 0.0
    %461 = vmatprep.subr.mxu0 0.0
    %462 = vmatpush1.msra.mxu0 0.0
    %463 = vmatprep.subr.mxu0 0.0
    %464 = vmatpush1.msra.mxu0 0.0
    %465 = vmatprep.subr.mxu0 0.0
    %466 = vmatpush1.msra.mxu0 0.0
    %467 = vmatprep.subr.mxu0 0.0
    %468 = vmatpush1.msra.mxu0 0.0
    %469 = vmatprep.subr.mxu0 0.0
    %470 = vmatpush1.msra.mxu0 0.0
    %471 = vmatprep.subr.mxu0 0.0
    %472 = vmatpush1.msra.mxu0 0.0
    %473 = vmatprep.subr.mxu0 0.0
    %474 = vmatpush1.msra.mxu0 0.0
    %475 = vmatprep.subr.mxu0 0.0
    %476 = vmatpush1.msra.mxu0 0.0
    %477 = vmatprep.subr.mxu0 0.0
    %478 = vmatpush1.msra.mxu0 0.0
    %479 = vmatprep.subr.mxu0 0.0
    %480 = vmatpush1.msra.mxu0 0.0
    %481 = vmatprep.subr.mxu0 0.0
    %482 = vmatpush1.msra.mxu0 0.0
    %483 = vmatprep.subr.mxu0 0.0
    %484 = vmatpush1.msra.mxu0 0.0
    %485 = vmatprep.subr.mxu0 0.0
    %486 = vmatpush1.msra.mxu0 0.0
    %487 = vmatprep.subr.mxu0 0.0
    %488 = vmatpush1.msra.mxu0 0.0
    %489 = vmatprep.subr.mxu0 0.0
    %490 = vmatpush1.msra.mxu0 0.0
    %491 = vmatprep.subr.mxu0 0.0
    %492 = vmatpush1.msra.mxu0 0.0
    %493 = vmatprep.subr.mxu0 0.0
    %494 = vmatpush1.msra.mxu0 0.0
    %495 = vmatprep.subr.mxu0 0.0
    %496 = vmatpush1.msra.mxu0 0.0
    %497 = vmatprep.subr.mxu0 0.0
    %498 = vmatpush1.msra.mxu0 0.0
    %499 = vmatprep.subr.mxu0 0.0
    %500 = vmatpush1.msra.mxu0 0.0
    %501 = vmatprep.subr.mxu0 0.0
    %502 = vmatpush1.msra.mxu0 0.0
    %503 = vmatprep.subr.mxu0 0.0
    %504 = vmatpush1.msra.mxu0 0.0
    %505 = vmatprep.subr.mxu0 0.0
    %506 = vmatpush1.msra.mxu0 0.0
    %507 = vmatprep.subr.mxu0 0.0
    %508 = vmatpush1.msra.mxu0 0.0
    %509 = vmatprep.subr.mxu0 0.0
    %510 = vmatpush1.msra.mxu0 0.0
    %511 = vmatprep.subr.mxu0 0.0
    %512 = vmatpush1.msra.mxu0 0.0
    %513 = vmatprep.mubr.f32.mxu0 0.0
    %514 = vmatmul.mubr.f32.gmra.mrb[0].mxu0 %v447
    %v515 = vpop.f32.mrb[0].mxu0
    %v516 = vadd.f32 0.0, %v515
    %v517 = vpop.f32.mrb[0].mxu0
    %518 = vdwg.mxu0
    %v519 = vmul.f32 %v438, %v438
    %v521 = vsel %vm121, %v519, 0
    %523 = vmatprep.subr.mxu0 0.0
    %524 = vmatpush1.msra.mxu0 %v437
    %525 = vmatprep.subr.mxu0 0.0
    %526 = vmatpush1.msra.mxu0 0.0
    %527 = vmatprep.subr.mxu0 0.0
    %528 = vmatpush1.msra.mxu0 0.0
    %529 = vmatprep.subr.mxu0 0.0
    %530 = vmatpush1.msra.mxu0 0.0
    %531 = vmatprep.subr.mxu0 0.0
    %532 = vmatpush1.msra.mxu0 0.0
    %533 = vmatprep.subr.mxu0 0.0
    %534 = vmatpush1.msra.mxu0 0.0
    %535 = vmatprep.subr.mxu0 0.0
    %536 = vmatpush1.msra.mxu0 0.0
    %537 = vmatprep.subr.mxu0 0.0
    %538 = vmatpush1.msra.mxu0 0.0
    %539 = vmatprep.subr.mxu0 0.0
    %540 = vmatpush1.msra.mxu0 0.0
    %541 = vmatprep.subr.mxu0 0.0
    %542 = vmatpush1.msra.mxu0 0.0
    %543 = vmatprep.subr.mxu0 0.0
    %544 = vmatpush1.msra.mxu0 0.0
    %545 = vmatprep.subr.mxu0 0.0
    %546 = vmatpush1.msra.mxu0 0.0
    %547 = vmatprep.subr.mxu0 0.0
    %548 = vmatpush1.msra.mxu0 0.0
    %549 = vmatprep.subr.mxu0 0.0
    %550 = vmatpush1.msra.mxu0 0.0
    %551 = vmatprep.subr.mxu0 0.0
    %552 = vmatpush1.msra.mxu0 0.0
    %553 = vmatprep.subr.mxu0 0.0
    %554 = vmatpush1.msra.mxu0 0.0
    %555 = vmatprep.subr.mxu0 0.0
    %556 = vmatpush1.msra.mxu0 0.0
    %557 = vmatprep.subr.mxu0 0.0
    %558 = vmatpush1.msra.mxu0 0.0
    %559 = vmatprep.subr.mxu0 0.0
    %560 = vmatpush1.msra.mxu0 0.0
    %561 = vmatprep.subr.mxu0 0.0
    %562 = vmatpush1.msra.mxu0 0.0
    %563 = vmatprep.subr.mxu0 0.0
    %564 = vmatpush1.msra.mxu0 0.0
    %565 = vmatprep.subr.mxu0 0.0
    %566 = vmatpush1.msra.mxu0 0.0
    %567 = vmatprep.subr.mxu0 0.0
    %568 = vmatpush1.msra.mxu0 0.0
    %569 = vmatprep.subr.mxu0 0.0
    %570 = vmatpush1.msra.mxu0 0.0
    %571 = vmatprep.subr.mxu0 0.0
    %572 = vmatpush1.msra.mxu0 0.0
    %573 = vmatprep.subr.mxu0 0.0
    %574 = vmatpush1.msra.mxu0 0.0
    %575 = vmatprep.subr.mxu0 0.0
    %576 = vmatpush1.msra.mxu0 0.0
    %577 = vmatprep.subr.mxu0 0.0
    %578 = vmatpush1.msra.mxu0 0.0
    %579 = vmatprep.subr.mxu0 0.0
    %580 = vmatpush1.msra.mxu0 0.0
    %581 = vmatprep.subr.mxu0 0.0
    %582 = vmatpush1.msra.mxu0 0.0
    %583 = vmatprep.subr.mxu0 0.0
    %584 = vmatpush1.msra.mxu0 0.0
    %585 = vmatprep.subr.mxu0 0.0
    %586 = vmatpush1.msra.mxu0 0.0
    %587 = vmatprep.mubr.f32.mxu0 0.0
    %588 = vmatmul.mubr.f32.gmra.mrb[0].mxu0 %v521
    %v589 = vpop.f32.mrb[0].mxu0
    %v590 = vadd.f32 0.0, %v589
    %v591 = vpop.f32.mrb[0].mxu0
    %592 = vdwg.mxu0
    %v593 = vld [vmem:[%s9] sm:$0x1]
    %v594 = vld [vmem:[%s9 + $0x1] sm:$0x1]
    %v595 = vld [vmem:[%s9 + $0x2] sm:$0x1]
    %v596 = vmul.f32 %v595, %v593
    %v597 = vmul.f32 %v596, %v593
    %v598 = vsub.f32 %v594, %v597
    %v599 = vmul.f32 %v445, %v598
    %v600 = vmul.f32 %v596, 2.0
    %v601 = vmul.f32 %v600, %v516
    %v602 = vadd.f32 %v599, %v601
    %v603 = vmul.f32 %v595, %v590
    %v604 = vsub.f32 %v602, %v603
    %vm605 = vcmp.gt.f32.partialorder %v445, 0.0
    %v606 = vsel %vm605, %v604, 0.0
    %v607 = vld [vmem:[#allocation3] sm:$0x1]
    %vm608 = vcmask 24576
    %v609 = vsel %vm608, %v606, 0.0
    %610 = vadd.xlane.f32.xlu0 %v609
    %v611 = vpop.xlane.xlu0 %610
    %v612 = vadd.f32 %v607, %v611
    %vm613 = vcmask 0
    %614 = vst.msk [vmem:[#allocation3] sm:$0x1] %vm613, %v612
    // Predicated region
    $region46: #{tpu_custom_call.1} parent=1 // pred_check
      %p615 = pneg %p114
    $region47: #{tpu_custom_call.1} parent=1 // pred_check_branch
      %617 = sbr.rel (%p615) target = $region49
    $region48: #{tpu_custom_call.1} parent=1 // pred_region
      %v618 = vld [vmem:[#allocation3] sm:$0x1]
      %v619 = vmul.f32 %v618, -0.125
      %620 = vst.msk [vmem:[#allocation4] sm:$0x1] %vm613, %v619
    $region49: #{tpu_custom_call.1} parent=1 // pred_fallthru
      _
    // Predicated region
    $region50: #{tpu_custom_call.1} parent=1 // pred_check
      _
    $region51: #{tpu_custom_call.1} parent=1 // pred_check_branch
      %622 = sbr.rel (0) target = $region53
    $region52: #{tpu_custom_call.1} parent=1 // pred_region
      %s624 = ssub.s32 16, 16
      %625 = vsyncadd [#allocation5], %s624
      %s627 = sshll.u32 [#allocation4], 4
      %s628 = int_to_ptr.vmem [resolvable:$true] %s627
      %630 = dma.vmem_to_hbm [thread:$0]  %s628, 16, %s10, [#allocation5]
    $region53: #{tpu_custom_call.1} parent=1 // pred_fallthru
      _
    // Predicated region
    $region54: #{tpu_custom_call.1} parent=1 // pred_check
      _
    $region55: #{tpu_custom_call.1} parent=1 // pred_check_branch
      %632 = sbr.rel (0) target = $region57
    $region56: #{tpu_custom_call.1} parent=1 // pred_region
      %633 = dma.done [#allocation5], 16
    $region57: #{tpu_custom_call.1} parent=1 // pred_fallthru
      _
    %634 = vsyncpa [#allocation5], 1

</llo_original>
